<compile_context>
chip_gen: v5e
topology: v5e:2x2
jax: 0.10.0
libtpu: 0.0.40
codegen_flags: <defaults>
</compile_context>

<pallas_src>
import functools

import jax
import jax.numpy as jnp
from jax.experimental import pallas as pl
from jax.experimental.pallas import tpu as pltpu

LANE = 128                       # lane width of the 2-D slab
SUBQ = 32                        # sublane quantum for int8 (32 rows / vreg)
SMALL_BLOCK_BYTES = 2 << 20      # below this (f32 x bytes): single block
TARGET_BLOCK_BYTES = 4 << 20     # ~4 MiB of f32 per x block for big arrays
MIN_GRID_STEPS = 8               # >= ~4 grid steps per core on a 2-TC chip
ROW_BYTES = LANE * 4             # f32 bytes per slab row


def _round_up(n: int, m: int) -> int:
    return ((n + m - 1) // m) * m


def _choose_block_rows(rows: int) -> int:
    """Pick the x-block row count (second-minor dim of the (rows, 128) slab)."""
    if rows <= SUBQ or rows * ROW_BYTES <= SMALL_BLOCK_BYTES:
        return rows  # block dim == full array dim is always legal
    target = max(SUBQ, (TARGET_BLOCK_BYTES // ROW_BYTES) // SUBQ * SUBQ)
    # Keep >= MIN_GRID_STEPS blocks so the pipeline has work to overlap and
    # both v7x TensorCores get several blocks each.
    cap = _round_up(pl.cdiv(rows, MIN_GRID_STEPS), SUBQ)
    block = min(target, cap, rows)
    return max(SUBQ, (block // SUBQ) * SUBQ)


def _dimension_semantics():
    """CORE_PARALLEL on v7x (2 TCs/chip); plain 'parallel' elsewhere."""
    kind = ""
    try:
        kind = jax.devices()[0].device_kind.lower()
    except Exception:  # pragma: no cover - defensive only
        pass
    if ("v7" in kind) or ("7x" in kind) or ("tpu7" in kind):
        return (pltpu.CORE_PARALLEL,)
    return ("parallel",)


def _make_gste_kernel(n_val: int, interval: float):
    """Elementwise GSTE forward kernel; level loop statically unrolled."""

    def kernel(params_ref, x_ref, mask_ref, out_ref):
        # params layout (SMEM, f32, length 1 + n_val):
        #   [0]            scale1
        #   [1 : 1+n_val]  thre_forward
        x = x_ref[...].astype(jnp.float32)
        x_forward = x * params_ref[0]
        # n_val is tiny (4 for num_bits=2); static unroll is fine.  For
        # n_val >= 64 switch to lax.fori_loop to avoid vreg pressure.
        for i in range(n_val):
            step_right = jnp.float32((i + 1) * interval)
            x_forward = jnp.where(x > params_ref[1 + i], step_right, x_forward)
        # PyTorch's (x_forward.detach() + x_backward - x_backward.detach()) is
        # autograd wiring only; its forward value is x_forward, so the
        # value-dead x_backward branch is omitted.
        out_ref[...] = (x_forward * mask_ref[...].astype(jnp.float32)).astype(
            out_ref.dtype
        )

    return kernel


@functools.partial(jax.jit, static_argnames=("n_val", "interval"))
def gste_forward(x, mask, start, a, scale1, *, n_val: int, interval: float):
    """GSTE forward.  x: any shape; mask: same shape, any dtype (0/1 values)."""
    orig_shape = x.shape
    dtype = x.dtype
    total = x.size

    # Tiny parameter glue (cumsums) stays in plain JAX.
    half = a / 2.0
    thre_forward = start + jnp.cumsum(
        jnp.concatenate([half[:1], half[1:] + half[:-1]])
    )
    params = jnp.concatenate(
        [scale1.reshape(-1), thre_forward]
    ).astype(jnp.float32)

    xf = x.reshape(-1)
    mf = mask.reshape(-1)

    bulk = (total // LANE) * LANE   # 128-aligned prefix -> kernel
    tail = total - bulk             # < 128 trailing elements -> plain JAX

    pieces = []

    if bulk:
        xb = xf if tail == 0 else xf[:bulk]
        mb = mf if tail == 0 else mf[:bulk]
        rows = bulk // LANE
        x2 = xb.reshape(rows, LANE)   # free bitcast of contiguous memory
        m2 = mb.reshape(rows, LANE)

        block_rows = _choose_block_rows(rows)
        grid = (pl.cdiv(rows, block_rows),)

        mask_bytes = jnp.dtype(mask.dtype).itemsize
        cost = pl.CostEstimate(
            flops=bulk * (2 * n_val + 3),
            transcendentals=0,
            bytes_accessed=bulk * (4 + mask_bytes + 4),
        )

        out2 = pl.pallas_call(
            _make_gste_kernel(n_val, interval),
            out_shape=jax.ShapeDtypeStruct((rows, LANE), dtype),
            grid_spec=pltpu.PrefetchScalarGridSpec(
                num_scalar_prefetch=1,  # params -> SMEM, passed first to kernel
                grid=grid,
                in_specs=[
                    pl.BlockSpec((block_rows, LANE), lambda i, p: (i, 0)),
                    pl.BlockSpec((block_rows, LANE), lambda i, p: (i, 0)),
                ],
                out_specs=pl.BlockSpec((block_rows, LANE), lambda i, p: (i, 0)),
            ),
            compiler_params=pltpu.CompilerParams(
                dimension_semantics=_dimension_semantics(),
                # 4 MiB x + 4 MiB out + int8 mask, double buffered, needs more
                # than v5e's 16 MiB default scoped-VMEM limit.
                vmem_limit_bytes=32 * 1024 * 1024,
            ),
            cost_estimate=cost,
        )(params, x2, m2)
        pieces.append(out2.reshape(-1))

    if tail:
        # At most 127 elements: plain JAX mirror of the kernel math.
        x_t = xf[bulk:].astype(jnp.float32)
        m_t = mf[bulk:].astype(jnp.float32)
        t_fwd = x_t * params[0]
        for i in range(n_val):
            step_right = jnp.float32((i + 1) * interval)
            t_fwd = jnp.where(x_t > params[1 + i], step_right, t_fwd)
        pieces.append((t_fwd * m_t).astype(dtype))

    out_flat = pieces[0] if len(pieces) == 1 else jnp.concatenate(pieces)
    return out_flat.reshape(orig_shape)


def gste_reference(x, mask, start, a, scale1, *, n_val, interval):
    """Pure-JAX reference mirroring the PyTorch forward exactly."""
    mask = mask.astype(x.dtype)
    x_forward = x * scale1
    x_backward = x
    half = a / 2.0
    thre_forward = start + jnp.cumsum(
        jnp.concatenate([half[:1], half[1:] + half[:-1]])
    )
    thre_backward = start + jnp.cumsum(
        jnp.concatenate([jnp.zeros((1,), a.dtype), a[:-1]])
    )
    for i in range(n_val):
        step_right = jnp.float32((i + 1) * interval)
        x_forward = jnp.where(x > thre_forward[i], step_right, x_forward)
        x_backward = jnp.where(
            x > thre_backward[i],
            interval / a[i] * (x - thre_backward[i]) + step_right - interval,
            x_backward,
        )
    return ((x_forward + x_backward) - x_backward) * mask


if __name__ == "__main__":
    # Module config: GSTE(num_bits=2)
    num_bits = 2
    n_val = 2 ** num_bits
    init_range = 2.0
    interval = init_range / n_val

    # Deterministic parameter init, matching __init__.
    start = jnp.array([0.0], dtype=jnp.float32)
    a = jnp.full((n_val,), interval, dtype=jnp.float32)
    scale1 = jnp.array([1.0], dtype=jnp.float32)
    # (scale2 / eps exist in the module but are unused in forward.)

    key = jax.random.PRNGKey(0)
    kx, km = jax.random.split(key)

    # Case 1: numel % 128 == 0 (pure kernel path), NCHW-style small shape.
    x = jax.random.normal(kx, (2, 4, 16, 16), dtype=jnp.float32)
    mask = (jax.random.uniform(km, (2, 4, 16, 16)) > 0.5).astype(jnp.int8)
    out = gste_forward(x, mask, start, a, scale1, n_val=n_val, interval=interval)
    out = jax.block_until_ready(out)
    ref = gste_reference(x, mask, start, a, scale1, n_val=n_val, interval=interval)
    assert out.shape == x.shape and out.dtype == x.dtype
    assert jnp.allclose(out, ref, atol=1e-5, rtol=1e-5), "mismatch (aligned case)"

    # Case 2: ragged numel (kernel on the 128-aligned bulk + plain-JAX tail).
    x2 = jax.random.normal(kx, (3, 7, 11, 5), dtype=jnp.float32)  # 1155 elems
    mask2 = (jax.random.uniform(km, (3, 7, 11, 5)) > 0.5).astype(jnp.int8)
    out2 = gste_forward(x2, mask2, start, a, scale1, n_val=n_val, interval=interval)
    out2 = jax.block_until_ready(out2)
    ref2 = gste_reference(x2, mask2, start, a, scale1, n_val=n_val, interval=interval)
    assert out2.shape == x2.shape and out2.dtype == x2.dtype
    assert jnp.allclose(out2, ref2, atol=1e-5, rtol=1e-5), "mismatch (ragged case)"

    print("KERNEL_OK")
</pallas_src>

<mosaic_0001>
module attributes {stable_mosaic.version = 11 : i64} {
  func.func @kernel(%arg0: i32, %arg1: memref<5xf32, #tpu.memory_space<smem>>, %arg2: memref<16x128xf32, #tpu.memory_space<vmem>>, %arg3: memref<16x128xi8, #tpu.memory_space<vmem>>, %arg4: memref<16x128xf32, #tpu.memory_space<vmem>>) attributes {dimension_semantics = [#tpu.dimension_semantics<parallel>], iteration_bounds = array<i64: 1>, scalar_prefetch = 1 : i64, scratch_operands = 0 : i64, tpu.core_type = #tpu.core_type<tc>, window_params = [{transform_indices = @transform_0, window_bounds = array<i64: 16, 128>}, {transform_indices = @transform_1, window_bounds = array<i64: 16, 128>}, {transform_indices = @transform_2, window_bounds = array<i64: 16, 128>}]} {
    %c0 = arith.constant 0 : index
    %c0_0 = arith.constant 0 : index
    %0 = vector.load %arg2[%c0, %c0_0] : memref<16x128xf32, #tpu.memory_space<vmem>>, vector<16x128xf32>
    %c0_1 = arith.constant 0 : index
    %1 = memref.load %arg1[%c0_1] : memref<5xf32, #tpu.memory_space<smem>>
    %2 = vector.broadcast %1 : f32 to vector<16x128xf32>
    %3 = arith.mulf %0, %2 : vector<16x128xf32>
    %c1 = arith.constant 1 : index
    %4 = memref.load %arg1[%c1] : memref<5xf32, #tpu.memory_space<smem>>
    %5 = vector.broadcast %4 : f32 to vector<16x128xf32>
    %6 = arith.cmpf ogt, %0, %5 : vector<16x128xf32>
    %cst = arith.constant 5.000000e-01 : f32
    %7 = vector.broadcast %cst : f32 to vector<16x128xf32>
    %8 = arith.select %6, %7, %3 : vector<16x128xi1>, vector<16x128xf32>
    %c2 = arith.constant 2 : index
    %9 = memref.load %arg1[%c2] : memref<5xf32, #tpu.memory_space<smem>>
    %10 = vector.broadcast %9 : f32 to vector<16x128xf32>
    %11 = arith.cmpf ogt, %0, %10 : vector<16x128xf32>
    %cst_2 = arith.constant 1.000000e+00 : f32
    %12 = vector.broadcast %cst_2 : f32 to vector<16x128xf32>
    %13 = arith.select %11, %12, %8 : vector<16x128xi1>, vector<16x128xf32>
    %c3 = arith.constant 3 : index
    %14 = memref.load %arg1[%c3] : memref<5xf32, #tpu.memory_space<smem>>
    %15 = vector.broadcast %14 : f32 to vector<16x128xf32>
    %16 = arith.cmpf ogt, %0, %15 : vector<16x128xf32>
    %cst_3 = arith.constant 1.500000e+00 : f32
    %17 = vector.broadcast %cst_3 : f32 to vector<16x128xf32>
    %18 = arith.select %16, %17, %13 : vector<16x128xi1>, vector<16x128xf32>
    %c4 = arith.constant 4 : index
    %19 = memref.load %arg1[%c4] : memref<5xf32, #tpu.memory_space<smem>>
    %20 = vector.broadcast %19 : f32 to vector<16x128xf32>
    %21 = arith.cmpf ogt, %0, %20 : vector<16x128xf32>
    %cst_4 = arith.constant 2.000000e+00 : f32
    %22 = vector.broadcast %cst_4 : f32 to vector<16x128xf32>
    %23 = arith.select %21, %22, %18 : vector<16x128xi1>, vector<16x128xf32>
    %c0_5 = arith.constant 0 : index
    %c0_6 = arith.constant 0 : index
    %24 = vector.load %arg3[%c0_5, %c0_6] : memref<16x128xi8, #tpu.memory_space<vmem>>, vector<16x128xi8>
    %25 = arith.sitofp %24 : vector<16x128xi8> to vector<16x128xf32>
    %26 = arith.mulf %23, %25 : vector<16x128xf32>
    %c0_7 = arith.constant 0 : index
    %c0_8 = arith.constant 0 : index
    %27 = vector.load %arg4[%c0_7, %c0_8] : memref<16x128xf32, #tpu.memory_space<vmem>>, vector<16x128xf32>
    tpu.vector_store %arg4[%c0_7, %c0_8], %26 {strides = array<i32>} : memref<16x128xf32, #tpu.memory_space<vmem>>, vector<16x128xf32>,
    return
  }
  func.func @transform_0(%arg0: i32, %arg1: memref<5xf32, #tpu.memory_space<smem>>) -> (i32, i32) {
    %c0_i32 = arith.constant 0 : i32
    %c0_i32_0 = arith.constant 0 : i32
    return %arg0, %c0_i32 : i32, i32
  }
  func.func @transform_1(%arg0: i32, %arg1: memref<5xf32, #tpu.memory_space<smem>>) -> (i32, i32) {
    %c0_i32 = arith.constant 0 : i32
    %c0_i32_0 = arith.constant 0 : i32
    return %arg0, %c0_i32 : i32, i32
  }
  func.func @transform_2(%arg0: i32, %arg1: memref<5xf32, #tpu.memory_space<smem>>) -> (i32, i32) {
    %c0_i32 = arith.constant 0 : i32
    %c0_i32_0 = arith.constant 0 : i32
    return %arg0, %c0_i32 : i32, i32
  }
}

</mosaic_0001>

<llo_original>
// kernel: gste_forward.1
$region0: #{gste_forward.1}
  #allocation0 [shape = 'u32[]', space=smem, size = 0x4, offset = 0x4, fixed_abs, tag = 'smem constant byte address 0x4 - core index']
  #allocation1 [shape = 'u32[72,128]{1,0:T(1,128)}', space=vmem, size = 0x9000, scoped, tag = 'internal scratch']
  #allocation2 [shape = 's32[1]{0}', space=sflag, size = 0x4, scoped, tag = 'scoped memory for gste_forward.1']
  #allocation3 [shape = 'u8[512]{0}', space=smem, size = 0x200, scoped, tag = 'prefetched SMEM operand 0']
  %s0 = inlined_call_operand.vmem [shape: f32[5], index: 0, kind: input, shape index: {}]
  %s1 = inlined_call_operand.vmem [shape: f32[16,128], index: 1, kind: input, shape index: {}]
  %s2 = inlined_call_operand.vmem [shape: s8[16,128], index: 2, kind: input, shape index: {}]
  %s3 = inlined_call_operand.vmem [shape: f32[16,128], index: 3, kind: output, shape index: {}]
  %s4 = sld [smem:[#allocation0]]
  $region18: #{gste_forward.1} parent=0
    _
  %s6 = ssub.s32 1, %s4
  %s7 = scalar_select 0, %s6, %s4
  %s9 = sshll.u32 %s0, 4
  %s10 = int_to_ptr.vmem [resolvable:$true] %s9
  %12 = dma.vmem_to_smem %s10, 16, [#allocation3], [#allocation2]
  %14 = dma.done [#allocation2], 16
  %15 = sfence
  // Predicated region
  $region2: #{gste_forward.1} parent=0 // pred_check
    _
  $region3: #{gste_forward.1} parent=0 // pred_check_branch
    %17 = sbr.rel (0) target = $region5
  $region4: #{gste_forward.1} parent=0 // pred_region
    _
  $region5: #{gste_forward.1} parent=0 // pred_fallthru
    _
  // Predicated region
  $region6: #{gste_forward.1} parent=0 // pred_check
    _
  $region7: #{gste_forward.1} parent=0 // pred_check_branch
    %19 = sbr.rel (0) target = $region9
  $region8: #{gste_forward.1} parent=0 // pred_region
    _
  $region9: #{gste_forward.1} parent=0 // pred_fallthru
    _
  %v20 = vld [vmem:[%s1] sm:$0xff]
  %v21 = vld [vmem:[%s1 + $0x8] sm:$0xff]
  %s22 = sld [smem:[#allocation3]]
  %v23 = vstv %s22
  %v24 = vmul.f32 %v20, %v23
  %v25 = vmul.f32 %v21, %v23
  %s26 = sld [smem:[#allocation3 + $0x1]]
  %v27 = vstv %s26
  %vm28 = vcmp.gt.f32.partialorder %v20, %v27
  %vm29 = vcmp.gt.f32.partialorder %v21, %v27
  %v30 = vsel %vm28, 0.5, %v24
  %v31 = vsel %vm29, 0.5, %v25
  %s32 = sld [smem:[#allocation3 + $0x2]]
  %v33 = vstv %s32
  %vm34 = vcmp.gt.f32.partialorder %v20, %v33
  %vm35 = vcmp.gt.f32.partialorder %v21, %v33
  %v36 = vsel %vm34, 1.0, %v30
  %v37 = vsel %vm35, 1.0, %v31
  %s38 = sld [smem:[#allocation3 + $0x3]]
  %v39 = vstv %s38
  %vm40 = vcmp.gt.f32.partialorder %v20, %v39
  %vm41 = vcmp.gt.f32.partialorder %v21, %v39
  %v42 = vsel %vm40, 1.5, %v36
  %v43 = vsel %vm41, 1.5, %v37
  %s44 = sld [smem:[#allocation3 + $0x4]]
  %v45 = vstv %s44
  %vm46 = vcmp.gt.f32.partialorder %v20, %v45
  %vm47 = vcmp.gt.f32.partialorder %v21, %v45
  %v48 = vsel %vm46, 2.0, %v42
  %v49 = vsel %vm47, 2.0, %v43
  %v50 = vld [vmem:[%s2] sm:$0x3]
  %v51 = vld [vmem:[%s2 + $0x2] sm:$0x3]
  %v52 = vunpack.c.0.s8 %v50
  %v53 = vunpack.c.0.s8 %v51
  %v54 = vcvt.s32.f32 %v52
  %v55 = vcvt.s32.f32 %v53
  %v56 = vmul.f32 %v48, %v54
  %v57 = vmul.f32 %v49, %v55
  %58 = vst [vmem:[%s3] sm:$0xff] %v56
  %59 = vst [vmem:[%s3 + $0x8] sm:$0xff] %v57
  // Predicated region
  $region10: #{gste_forward.1} parent=0 // pred_check
    _
  $region11: #{gste_forward.1} parent=0 // pred_check_branch
    %61 = sbr.rel (0) target = $region13
  $region12: #{gste_forward.1} parent=0 // pred_region
    _
  $region13: #{gste_forward.1} parent=0 // pred_fallthru
    _
  // Predicated region
  $region14: #{gste_forward.1} parent=0 // pred_check
    _
  $region15: #{gste_forward.1} parent=0 // pred_check_branch
    %63 = sbr.rel (0) target = $region17
  $region16: #{gste_forward.1} parent=0 // pred_region
    _
  $region17: #{gste_forward.1} parent=0 // pred_fallthru
    _

</llo_original>
